<compile_context>
chip_gen: v7x
topology: tpu7x:2x2x1
jax: 0.10.0
libtpu: 0.0.40
codegen_flags: <defaults>
</compile_context>

<pallas_src>
import math
import numpy as np
import jax
import jax.numpy as jnp
from jax import lax
from jax.experimental import pallas as pl
from jax.experimental.pallas import tpu as pltpu


def _gaussian_taps_1d(size: int, sigma: float):
    """Normalized 1D gaussian taps; outer(g, g) equals the torch 2D kernel / its sum."""
    offs = np.arange(-(size // 2), size // 2 + 1, dtype=np.float64)
    g = np.exp(-(offs ** 2) / (2.0 * sigma ** 2))
    g = g / g.sum()
    return [float(v) for v in g]


def _gaussian_kernel_2d(size: int, sigma: float) -> np.ndarray:
    """Same construction as Gaussian.gaussian_kernel (normalized 2D gaussian)."""
    offs = np.arange(-(size // 2), size // 2 + 1, dtype=np.float64)
    yy, xx = np.meshgrid(offs, offs, indexing="ij")
    k = (1.0 / (2.0 * math.pi * sigma ** 2)) * np.exp(-(xx ** 2 + yy ** 2) / (2.0 * sigma ** 2))
    return (k / k.sum()).astype(np.float32)


def make_ega_forward(channel: int, size: int = 3, sigma: float = 1.0, eps: float = 1e-5):
    """Fused EGA forward: Scharr(BN,ReLU) -> Gaussian(BN,ReLU) -> conv_extra(x + gaussian)."""
    assert size % 2 == 1, "odd gaussian kernel size required for 'same' spatial size"
    g1d = _gaussian_taps_1d(size, sigma)
    half = size // 2

    @jax.jit
    def forward(x, bn1_gamma, bn1_beta, bn2_gamma, bn2_beta, w_extra, b_extra):
        n, c, h, w = x.shape
        assert c == channel
        p = h * w
        # Halo margin (>= max flat shift), rounded to a lane-tile multiple so the interior
        # store into the halo scratch is lane-aligned.
        max_shift = w * max(1, half)
        m = max(128, ((max_shift + 127) // 128) * 128)

        def kernel(x_ref, g1_ref, b1_ref, g2_ref, b2_ref, wex_ref, bex_ref, out_ref, halo_ref):
            xv = x_ref[...].astype(jnp.float32)            # (N, C, P); cast once per block
            # Column index of every flattened pixel (broadcasts over N and C).
            col = lax.broadcasted_iota(jnp.int32, (1, 1, p), 2) % w

            # Zero the halo scratch once; margins stay zero, interior is rewritten per source.
            halo_ref[...] = jnp.zeros((n, c, p + 2 * m), jnp.float32)

            def shifter(src):
                """Returns shift(off): y[..., q] = src[..., q + off], zero-filled outside."""
                halo_ref[:, :, m:m + p] = src              # lane-aligned interior store
                buf = halo_ref[...]

                def shift(off):
                    return buf[:, :, m + off:m + off + p]  # cheap shifted slice of the slab
                return shift

            def shift_w(shift, d):
                """Horizontal shift by d columns, zero padded at the image's W edges."""
                valid = (col < (w - d)) if d > 0 else (col >= (-d))
                return jnp.where(valid, shift(d), 0.0)

            def bn_relu(v, gamma, beta):
                """BatchNorm2d training-mode stats per channel (single pass) + affine + ReLU."""
                inv_cnt = 1.0 / float(n * p)
                s = jnp.sum(jnp.sum(v, axis=2, keepdims=True), axis=0, keepdims=True)
                ss = jnp.sum(jnp.sum(v * v, axis=2, keepdims=True), axis=0, keepdims=True)
                mean = s * inv_cnt
                var = ss * inv_cnt - mean * mean           # biased variance (torch normalization)
                scale = gamma * lax.rsqrt(var + eps)
                offset = beta - mean * scale
                return jnp.maximum(v * scale + offset, 0.0)

            # ---------------- Scharr block (both 3x3 filters are separable) ----------------
            sx = shifter(xv)
            x_up, x_dn = sx(-w), sx(w)                     # rows above / below
            sm_v = 3.0 * x_up + 10.0 * xv + 3.0 * x_dn     # vertical [3, 10, 3]
            dv_v = x_dn - x_up                             # vertical [-1, 0, 1]

            sa = shifter(sm_v)
            edges_x = shift_w(sa, 1) - shift_w(sa, -1)     # horizontal [-1, 0, 1]
            sb = shifter(dv_v)
            edges_y = 3.0 * shift_w(sb, -1) + 10.0 * dv_v + 3.0 * shift_w(sb, 1)

            edge = jnp.sqrt(edges_x * edges_x + edges_y * edges_y + 1e-6)
            edge = bn_relu(edge, g1_ref[...], b1_ref[...])

            # ------------- Gaussian block (separable blur: vertical, horizontal) -----------
            se = shifter(edge)
            blur_v = g1d[half] * edge
            for k in range(1, half + 1):
                blur_v = blur_v + g1d[half - k] * se(-k * w) + g1d[half + k] * se(k * w)
            sv = shifter(blur_v)
            blur = g1d[half] * blur_v
            for k in range(1, half + 1):
                blur = blur + g1d[half - k] * shift_w(sv, -k) + g1d[half + k] * shift_w(sv, k)
            gauss = bn_relu(blur, g2_ref[...], b2_ref[...])

            # ----------- conv_extra: fused 1x1 conv (channel mixing) on x + gauss ----------
            z = xv + gauss
            acc = jnp.zeros((n, c, p), jnp.float32)
            for ci in range(c):
                # wex_ref[ci] is column ci of the 1x1 weight, shaped (1, C_out, 1).
                acc = acc + wex_ref[ci] * z[:, ci:ci + 1, :]
            out_ref[...] = (acc + bex_ref[...]).astype(out_ref.dtype)

        # -------- free layout plumbing: reshapes only (no pad / transpose round trips) -----
        x2 = x.reshape(n, c, p)
        g1r = bn1_gamma.astype(jnp.float32).reshape(1, c, 1)
        b1r = bn1_beta.astype(jnp.float32).reshape(1, c, 1)
        g2r = bn2_gamma.astype(jnp.float32).reshape(1, c, 1)
        b2r = bn2_beta.astype(jnp.float32).reshape(1, c, 1)
        wex = jnp.transpose(w_extra.astype(jnp.float32).reshape(c, c), (1, 0)).reshape(c, 1, c, 1)
        bex = b_extra.astype(jnp.float32).reshape(1, c, 1)

        out2 = pl.pallas_call(
            kernel,
            out_shape=jax.ShapeDtypeStruct((n, c, p), x.dtype),
            in_specs=[pl.BlockSpec(memory_space=pltpu.VMEM)] * 7,
            out_specs=pl.BlockSpec(memory_space=pltpu.VMEM),
            scratch_shapes=[pltpu.VMEM((n, c, p + 2 * m), jnp.float32)],
            compiler_params=pltpu.CompilerParams(vmem_limit_bytes=32 * 1024 * 1024),
        )(x2, g1r, b1r, g2r, b2r, wex, bex)
        return out2.reshape(n, c, h, w)

    return forward


def _ega_reference(x, g1, b1, g2, b2, w_extra, b_extra, size, sigma, eps=1e-5):
    """Pure-JAX reference mirroring the PyTorch EGA forward (full 2D convs, centered BN)."""
    c = x.shape[1]
    hp = lax.Precision.HIGHEST

    def dwconv(v, k2d):
        wgt = jnp.asarray(np.tile(np.asarray(k2d, np.float32)[None, None], (c, 1, 1, 1)))
        return lax.conv_general_dilated(
            v, wgt, (1, 1), "SAME",
            dimension_numbers=("NCHW", "OIHW", "NCHW"),
            feature_group_count=c, precision=hp)

    def bn_relu(v, gamma, beta):
        mean = jnp.mean(v, axis=(0, 2, 3), keepdims=True)
        var = jnp.mean((v - mean) ** 2, axis=(0, 2, 3), keepdims=True)
        y = (v - mean) / jnp.sqrt(var + eps) * gamma[None, :, None, None] + beta[None, :, None, None]
        return jnp.maximum(y, 0.0)

    scharr_x = np.array([[-3., 0., 3.], [-10., 0., 10.], [-3., 0., 3.]], np.float32)
    scharr_y = np.array([[-3., -10., -3.], [0., 0., 0.], [3., 10., 3.]], np.float32)
    ex = dwconv(x, scharr_x)
    ey = dwconv(x, scharr_y)
    edge = bn_relu(jnp.sqrt(ex ** 2 + ey ** 2 + 1e-6), g1, b1)
    gauss = bn_relu(dwconv(edge, _gaussian_kernel_2d(size, sigma)), g2, b2)
    z = x + gauss
    w2d = w_extra.reshape(c, c)
    return jnp.einsum("oi,nihw->nohw", w2d, z, precision=hp) + b_extra[None, :, None, None]


if __name__ == "__main__":
    # EGA(channel=4) with defaults size=3, sigma=1.0
    channel, size, sigma = 4, 3, 1.0
    batch, height, width = 2, 16, 16

    key = jax.random.PRNGKey(0)
    k_x, k_w, k_b = jax.random.split(key, 3)
    x = jax.random.normal(k_x, (batch, channel, height, width), dtype=jnp.float32)

    # BatchNorm2d parameters at PyTorch default init (weight=1, bias=0), deterministic.
    bn1_gamma = jnp.ones((channel,), jnp.float32)
    bn1_beta = jnp.zeros((channel,), jnp.float32)
    bn2_gamma = jnp.ones((channel,), jnp.float32)
    bn2_beta = jnp.zeros((channel,), jnp.float32)
    # conv_extra (1x1 conv with bias): deterministic random init.
    bound = 1.0 / math.sqrt(channel)
    w_extra = jax.random.uniform(k_w, (channel, channel, 1, 1), jnp.float32, -bound, bound)
    b_extra = jax.random.uniform(k_b, (channel,), jnp.float32, -bound, bound)

    fwd = make_ega_forward(channel, size, sigma)
    out = fwd(x, bn1_gamma, bn1_beta, bn2_gamma, bn2_beta, w_extra, b_extra)
    jax.block_until_ready(out)

    assert out.shape == x.shape and out.dtype == x.dtype

    # Independent pure-JAX reference check (full 2D convs vs the kernel's separable passes).
    ref = _ega_reference(x, bn1_gamma, bn1_beta, bn2_gamma, bn2_beta,
                         w_extra, b_extra, size, sigma)
    assert float(jnp.max(jnp.abs(out - ref))) < 1e-2

    print("KERNEL_OK")
</pallas_src>

<mosaic_0001>
module attributes {stable_mosaic.version = 11 : i64} {
  func.func @kernel(%arg0: memref<2x4x256xf32, #tpu.memory_space<vmem>>, %arg1: memref<1x4x1xf32, #tpu.memory_space<vmem>>, %arg2: memref<1x4x1xf32, #tpu.memory_space<vmem>>, %arg3: memref<1x4x1xf32, #tpu.memory_space<vmem>>, %arg4: memref<1x4x1xf32, #tpu.memory_space<vmem>>, %arg5: memref<4x1x4x1xf32, #tpu.memory_space<vmem>>, %arg6: memref<1x4x1xf32, #tpu.memory_space<vmem>>, %arg7: memref<2x4x256xf32, #tpu.memory_space<vmem>>, %arg8: memref<2x4x512xf32, #tpu.memory_space<vmem>>) attributes {dimension_semantics = [], scalar_prefetch = 0 : i64, scratch_operands = 1 : i64, tpu.core_type = #tpu.core_type<tc>} {
    %c0 = arith.constant 0 : index
    %c0_0 = arith.constant 0 : index
    %c0_1 = arith.constant 0 : index
    %0 = vector.load %arg0[%c0, %c0_0, %c0_1] : memref<2x4x256xf32, #tpu.memory_space<vmem>>, vector<2x4x256xf32>
    %1 = tpu.iota {dimensions = array<i32: 2>} : vector<1x1x256xi32>
    %c16_i32 = arith.constant 16 : i32
    %c0_i32 = arith.constant 0 : i32
    %2 = arith.cmpi eq, %c16_i32, %c0_i32 : i32
    %c1_i32 = arith.constant 1 : i32
    %3 = arith.select %2, %c1_i32, %c16_i32 : i32
    %4 = vector.broadcast %3 : i32 to vector<1x1x256xi32>
    %5 = arith.remsi %1, %4 : vector<1x1x256xi32>
    %c0_i32_2 = arith.constant 0 : i32
    %6 = vector.broadcast %c0_i32_2 : i32 to vector<1x1x256xi32>
    %7 = arith.cmpi ne, %5, %6 : vector<1x1x256xi32>
    %c0_i32_3 = arith.constant 0 : i32
    %8 = vector.broadcast %c0_i32_3 : i32 to vector<1x1x256xi32>
    %9 = arith.cmpi slt, %5, %8 : vector<1x1x256xi32>
    %c0_i32_4 = arith.constant 0 : i32
    %10 = arith.cmpi slt, %3, %c0_i32_4 : i32
    %11 = vector.broadcast %10 : i1 to vector<1x1x256xi1>
    %12 = vector.broadcast %11 : vector<1x1x256xi1> to vector<1x1x256xi1>
    %13 = arith.xori %9, %12 : vector<1x1x256xi1>
    %14 = arith.andi %13, %7 : vector<1x1x256xi1>
    %15 = vector.broadcast %3 : i32 to vector<1x1x256xi32>
    %16 = arith.addi %5, %15 : vector<1x1x256xi32>
    %17 = arith.select %14, %16, %5 : vector<1x1x256xi1>, vector<1x1x256xi32>
    %cst = arith.constant 0.000000e+00 : f32
    %18 = vector.broadcast %cst : f32 to vector<2x4x512xf32>
    %c0_5 = arith.constant 0 : index
    %c0_6 = arith.constant 0 : index
    %c0_7 = arith.constant 0 : index
    %19 = vector.load %arg8[%c0_5, %c0_6, %c0_7] : memref<2x4x512xf32, #tpu.memory_space<vmem>>, vector<2x4x512xf32>
    tpu.vector_store %arg8[%c0_5, %c0_6, %c0_7], %18 {strides = array<i32>} : memref<2x4x512xf32, #tpu.memory_space<vmem>>, vector<2x4x512xf32>,
    %c0_8 = arith.constant 0 : index
    %c0_9 = arith.constant 0 : index
    %c128 = arith.constant 128 : index
    %20 = vector.load %arg8[%c0_8, %c0_9, %c128] : memref<2x4x512xf32, #tpu.memory_space<vmem>>, vector<2x4x256xf32>
    tpu.vector_store %arg8[%c0_8, %c0_9, %c128], %0 {strides = array<i32>} : memref<2x4x512xf32, #tpu.memory_space<vmem>>, vector<2x4x256xf32>,
    %c0_10 = arith.constant 0 : index
    %c0_11 = arith.constant 0 : index
    %c0_12 = arith.constant 0 : index
    %21 = vector.load %arg8[%c0_10, %c0_11, %c0_12] : memref<2x4x512xf32, #tpu.memory_space<vmem>>, vector<2x4x512xf32>
    %22 = vector.extract_strided_slice %21 {offsets = [0, 0, 112], sizes = [2, 4, 256], strides = [1, 1, 1]} : vector<2x4x512xf32> to vector<2x4x256xf32>
    %23 = vector.extract_strided_slice %21 {offsets = [0, 0, 144], sizes = [2, 4, 256], strides = [1, 1, 1]} : vector<2x4x512xf32> to vector<2x4x256xf32>
    %cst_13 = arith.constant 3.000000e+00 : f32
    %24 = vector.broadcast %cst_13 : f32 to vector<2x4x256xf32>
    %25 = arith.mulf %24, %22 : vector<2x4x256xf32>
    %cst_14 = arith.constant 1.000000e+01 : f32
    %26 = vector.broadcast %cst_14 : f32 to vector<2x4x256xf32>
    %27 = arith.mulf %26, %0 : vector<2x4x256xf32>
    %28 = arith.addf %25, %27 : vector<2x4x256xf32>
    %cst_15 = arith.constant 3.000000e+00 : f32
    %29 = vector.broadcast %cst_15 : f32 to vector<2x4x256xf32>
    %30 = arith.mulf %29, %23 : vector<2x4x256xf32>
    %31 = arith.addf %28, %30 : vector<2x4x256xf32>
    %32 = arith.subf %23, %22 : vector<2x4x256xf32>
    %c0_16 = arith.constant 0 : index
    %c0_17 = arith.constant 0 : index
    %c128_18 = arith.constant 128 : index
    %33 = vector.load %arg8[%c0_16, %c0_17, %c128_18] : memref<2x4x512xf32, #tpu.memory_space<vmem>>, vector<2x4x256xf32>
    tpu.vector_store %arg8[%c0_16, %c0_17, %c128_18], %31 {strides = array<i32>} : memref<2x4x512xf32, #tpu.memory_space<vmem>>, vector<2x4x256xf32>,
    %c0_19 = arith.constant 0 : index
    %c0_20 = arith.constant 0 : index
    %c0_21 = arith.constant 0 : index
    %34 = vector.load %arg8[%c0_19, %c0_20, %c0_21] : memref<2x4x512xf32, #tpu.memory_space<vmem>>, vector<2x4x512xf32>
    %c15_i32 = arith.constant 15 : i32
    %35 = vector.broadcast %c15_i32 : i32 to vector<1x1x256xi32>
    %36 = arith.cmpi slt, %17, %35 : vector<1x1x256xi32>
    %37 = vector.extract_strided_slice %34 {offsets = [0, 0, 129], sizes = [2, 4, 256], strides = [1, 1, 1]} : vector<2x4x512xf32> to vector<2x4x256xf32>
    %cst_22 = arith.constant 0.000000e+00 : f32
    %38 = vector.shape_cast %36 : vector<1x1x256xi1> to vector<1x1x256xi1>
    %39 = vector.broadcast %38 : vector<1x1x256xi1> to vector<2x4x256xi1>
    %40 = vector.broadcast %cst_22 : f32 to vector<2x4x256xf32>
    %41 = arith.select %39, %37, %40 : vector<2x4x256xi1>, vector<2x4x256xf32>
    %c1_i32_23 = arith.constant 1 : i32
    %42 = vector.broadcast %c1_i32_23 : i32 to vector<1x1x256xi32>
    %43 = arith.cmpi sge, %17, %42 : vector<1x1x256xi32>
    %44 = vector.extract_strided_slice %34 {offsets = [0, 0, 127], sizes = [2, 4, 256], strides = [1, 1, 1]} : vector<2x4x512xf32> to vector<2x4x256xf32>
    %cst_24 = arith.constant 0.000000e+00 : f32
    %45 = vector.shape_cast %43 : vector<1x1x256xi1> to vector<1x1x256xi1>
    %46 = vector.broadcast %45 : vector<1x1x256xi1> to vector<2x4x256xi1>
    %47 = vector.broadcast %cst_24 : f32 to vector<2x4x256xf32>
    %48 = arith.select %46, %44, %47 : vector<2x4x256xi1>, vector<2x4x256xf32>
    %49 = arith.subf %41, %48 : vector<2x4x256xf32>
    %c0_25 = arith.constant 0 : index
    %c0_26 = arith.constant 0 : index
    %c128_27 = arith.constant 128 : index
    %50 = vector.load %arg8[%c0_25, %c0_26, %c128_27] : memref<2x4x512xf32, #tpu.memory_space<vmem>>, vector<2x4x256xf32>
    tpu.vector_store %arg8[%c0_25, %c0_26, %c128_27], %32 {strides = array<i32>} : memref<2x4x512xf32, #tpu.memory_space<vmem>>, vector<2x4x256xf32>,
    %c0_28 = arith.constant 0 : index
    %c0_29 = arith.constant 0 : index
    %c0_30 = arith.constant 0 : index
    %51 = vector.load %arg8[%c0_28, %c0_29, %c0_30] : memref<2x4x512xf32, #tpu.memory_space<vmem>>, vector<2x4x512xf32>
    %c1_i32_31 = arith.constant 1 : i32
    %52 = vector.broadcast %c1_i32_31 : i32 to vector<1x1x256xi32>
    %53 = arith.cmpi sge, %17, %52 : vector<1x1x256xi32>
    %54 = vector.extract_strided_slice %51 {offsets = [0, 0, 127], sizes = [2, 4, 256], strides = [1, 1, 1]} : vector<2x4x512xf32> to vector<2x4x256xf32>
    %cst_32 = arith.constant 0.000000e+00 : f32
    %55 = vector.shape_cast %53 : vector<1x1x256xi1> to vector<1x1x256xi1>
    %56 = vector.broadcast %55 : vector<1x1x256xi1> to vector<2x4x256xi1>
    %57 = vector.broadcast %cst_32 : f32 to vector<2x4x256xf32>
    %58 = arith.select %56, %54, %57 : vector<2x4x256xi1>, vector<2x4x256xf32>
    %cst_33 = arith.constant 3.000000e+00 : f32
    %59 = vector.broadcast %cst_33 : f32 to vector<2x4x256xf32>
    %60 = arith.mulf %59, %58 : vector<2x4x256xf32>
    %cst_34 = arith.constant 1.000000e+01 : f32
    %61 = vector.broadcast %cst_34 : f32 to vector<2x4x256xf32>
    %62 = arith.mulf %61, %32 : vector<2x4x256xf32>
    %63 = arith.addf %60, %62 : vector<2x4x256xf32>
    %c15_i32_35 = arith.constant 15 : i32
    %64 = vector.broadcast %c15_i32_35 : i32 to vector<1x1x256xi32>
    %65 = arith.cmpi slt, %17, %64 : vector<1x1x256xi32>
    %66 = vector.extract_strided_slice %51 {offsets = [0, 0, 129], sizes = [2, 4, 256], strides = [1, 1, 1]} : vector<2x4x512xf32> to vector<2x4x256xf32>
    %cst_36 = arith.constant 0.000000e+00 : f32
    %67 = vector.shape_cast %65 : vector<1x1x256xi1> to vector<1x1x256xi1>
    %68 = vector.broadcast %67 : vector<1x1x256xi1> to vector<2x4x256xi1>
    %69 = vector.broadcast %cst_36 : f32 to vector<2x4x256xf32>
    %70 = arith.select %68, %66, %69 : vector<2x4x256xi1>, vector<2x4x256xf32>
    %cst_37 = arith.constant 3.000000e+00 : f32
    %71 = vector.broadcast %cst_37 : f32 to vector<2x4x256xf32>
    %72 = arith.mulf %71, %70 : vector<2x4x256xf32>
    %73 = arith.addf %63, %72 : vector<2x4x256xf32>
    %74 = arith.mulf %49, %49 : vector<2x4x256xf32>
    %75 = arith.mulf %73, %73 : vector<2x4x256xf32>
    %76 = arith.addf %74, %75 : vector<2x4x256xf32>
    %cst_38 = arith.constant 9.99999997E-7 : f32
    %77 = vector.broadcast %cst_38 : f32 to vector<2x4x256xf32>
    %78 = arith.addf %76, %77 : vector<2x4x256xf32>
    %79 = math.sqrt %78 : vector<2x4x256xf32>
    %c0_39 = arith.constant 0 : index
    %c0_40 = arith.constant 0 : index
    %c0_41 = arith.constant 0 : index
    %80 = vector.load %arg1[%c0_39, %c0_40, %c0_41] : memref<1x4x1xf32, #tpu.memory_space<vmem>>, vector<1x4x1xf32>
    %c0_42 = arith.constant 0 : index
    %c0_43 = arith.constant 0 : index
    %c0_44 = arith.constant 0 : index
    %81 = vector.load %arg2[%c0_42, %c0_43, %c0_44] : memref<1x4x1xf32, #tpu.memory_space<vmem>>, vector<1x4x1xf32>
    %cst_45 = arith.constant dense<0.000000e+00> : vector<2x4xf32>
    %82 = vector.multi_reduction <add>, %79, %cst_45 [2] : vector<2x4x256xf32> to vector<2x4xf32>
    %83 = vector.shape_cast %82 : vector<2x4xf32> to vector<2x4x1xf32>
    %cst_46 = arith.constant dense<0.000000e+00> : vector<4x1xf32>
    %84 = vector.multi_reduction <add>, %83, %cst_46 [0] : vector<2x4x1xf32> to vector<4x1xf32>
    %85 = vector.shape_cast %84 : vector<4x1xf32> to vector<1x4x1xf32>
    %86 = arith.mulf %79, %79 : vector<2x4x256xf32>
    %cst_47 = arith.constant dense<0.000000e+00> : vector<2x4xf32>
    %87 = vector.multi_reduction <add>, %86, %cst_47 [2] : vector<2x4x256xf32> to vector<2x4xf32>
    %88 = vector.shape_cast %87 : vector<2x4xf32> to vector<2x4x1xf32>
    %cst_48 = arith.constant dense<0.000000e+00> : vector<4x1xf32>
    %89 = vector.multi_reduction <add>, %88, %cst_48 [0] : vector<2x4x1xf32> to vector<4x1xf32>
    %90 = vector.shape_cast %89 : vector<4x1xf32> to vector<1x4x1xf32>
    %cst_49 = arith.constant 0.001953125 : f32
    %91 = vector.broadcast %cst_49 : f32 to vector<1x4x1xf32>
    %92 = arith.mulf %85, %91 : vector<1x4x1xf32>
    %cst_50 = arith.constant 0.001953125 : f32
    %93 = vector.broadcast %cst_50 : f32 to vector<1x4x1xf32>
    %94 = arith.mulf %90, %93 : vector<1x4x1xf32>
    %95 = arith.mulf %92, %92 : vector<1x4x1xf32>
    %96 = arith.subf %94, %95 : vector<1x4x1xf32>
    %cst_51 = arith.constant 9.99999974E-6 : f32
    %97 = vector.broadcast %cst_51 : f32 to vector<1x4x1xf32>
    %98 = arith.addf %96, %97 : vector<1x4x1xf32>
    %99 = math.rsqrt %98 : vector<1x4x1xf32>
    %100 = arith.mulf %80, %99 : vector<1x4x1xf32>
    %101 = arith.mulf %92, %100 : vector<1x4x1xf32>
    %102 = arith.subf %81, %101 : vector<1x4x1xf32>
    %103 = vector.broadcast %100 : vector<1x4x1xf32> to vector<2x4x256xf32>
    %104 = arith.mulf %79, %103 : vector<2x4x256xf32>
    %105 = vector.broadcast %102 : vector<1x4x1xf32> to vector<2x4x256xf32>
    %106 = arith.addf %104, %105 : vector<2x4x256xf32>
    %cst_52 = arith.constant 0.000000e+00 : f32
    %107 = vector.broadcast %cst_52 : f32 to vector<2x4x256xf32>
    %108 = arith.maximumf %106, %107 : vector<2x4x256xf32>
    %c0_53 = arith.constant 0 : index
    %c0_54 = arith.constant 0 : index
    %c128_55 = arith.constant 128 : index
    %109 = vector.load %arg8[%c0_53, %c0_54, %c128_55] : memref<2x4x512xf32, #tpu.memory_space<vmem>>, vector<2x4x256xf32>
    tpu.vector_store %arg8[%c0_53, %c0_54, %c128_55], %108 {strides = array<i32>} : memref<2x4x512xf32, #tpu.memory_space<vmem>>, vector<2x4x256xf32>,
    %c0_56 = arith.constant 0 : index
    %c0_57 = arith.constant 0 : index
    %c0_58 = arith.constant 0 : index
    %110 = vector.load %arg8[%c0_56, %c0_57, %c0_58] : memref<2x4x512xf32, #tpu.memory_space<vmem>>, vector<2x4x512xf32>
    %cst_59 = arith.constant 0.451862752 : f32
    %111 = vector.broadcast %cst_59 : f32 to vector<2x4x256xf32>
    %112 = arith.mulf %111, %108 : vector<2x4x256xf32>
    %113 = vector.extract_strided_slice %110 {offsets = [0, 0, 112], sizes = [2, 4, 256], strides = [1, 1, 1]} : vector<2x4x512xf32> to vector<2x4x256xf32>
    %cst_60 = arith.constant 0.274068624 : f32
    %114 = vector.broadcast %cst_60 : f32 to vector<2x4x256xf32>
    %115 = arith.mulf %114, %113 : vector<2x4x256xf32>
    %116 = arith.addf %112, %115 : vector<2x4x256xf32>
    %117 = vector.extract_strided_slice %110 {offsets = [0, 0, 144], sizes = [2, 4, 256], strides = [1, 1, 1]} : vector<2x4x512xf32> to vector<2x4x256xf32>
    %cst_61 = arith.constant 0.274068624 : f32
    %118 = vector.broadcast %cst_61 : f32 to vector<2x4x256xf32>
    %119 = arith.mulf %118, %117 : vector<2x4x256xf32>
    %120 = arith.addf %116, %119 : vector<2x4x256xf32>
    %c0_62 = arith.constant 0 : index
    %c0_63 = arith.constant 0 : index
    %c128_64 = arith.constant 128 : index
    %121 = vector.load %arg8[%c0_62, %c0_63, %c128_64] : memref<2x4x512xf32, #tpu.memory_space<vmem>>, vector<2x4x256xf32>
    tpu.vector_store %arg8[%c0_62, %c0_63, %c128_64], %120 {strides = array<i32>} : memref<2x4x512xf32, #tpu.memory_space<vmem>>, vector<2x4x256xf32>,
    %c0_65 = arith.constant 0 : index
    %c0_66 = arith.constant 0 : index
    %c0_67 = arith.constant 0 : index
    %122 = vector.load %arg8[%c0_65, %c0_66, %c0_67] : memref<2x4x512xf32, #tpu.memory_space<vmem>>, vector<2x4x512xf32>
    %cst_68 = arith.constant 0.451862752 : f32
    %123 = vector.broadcast %cst_68 : f32 to vector<2x4x256xf32>
    %124 = arith.mulf %123, %120 : vector<2x4x256xf32>
    %c1_i32_69 = arith.constant 1 : i32
    %125 = vector.broadcast %c1_i32_69 : i32 to vector<1x1x256xi32>
    %126 = arith.cmpi sge, %17, %125 : vector<1x1x256xi32>
    %127 = vector.extract_strided_slice %122 {offsets = [0, 0, 127], sizes = [2, 4, 256], strides = [1, 1, 1]} : vector<2x4x512xf32> to vector<2x4x256xf32>
    %cst_70 = arith.constant 0.000000e+00 : f32
    %128 = vector.shape_cast %126 : vector<1x1x256xi1> to vector<1x1x256xi1>
    %129 = vector.broadcast %128 : vector<1x1x256xi1> to vector<2x4x256xi1>
    %130 = vector.broadcast %cst_70 : f32 to vector<2x4x256xf32>
    %131 = arith.select %129, %127, %130 : vector<2x4x256xi1>, vector<2x4x256xf32>
    %cst_71 = arith.constant 0.274068624 : f32
    %132 = vector.broadcast %cst_71 : f32 to vector<2x4x256xf32>
    %133 = arith.mulf %132, %131 : vector<2x4x256xf32>
    %134 = arith.addf %124, %133 : vector<2x4x256xf32>
    %c15_i32_72 = arith.constant 15 : i32
    %135 = vector.broadcast %c15_i32_72 : i32 to vector<1x1x256xi32>
    %136 = arith.cmpi slt, %17, %135 : vector<1x1x256xi32>
    %137 = vector.extract_strided_slice %122 {offsets = [0, 0, 129], sizes = [2, 4, 256], strides = [1, 1, 1]} : vector<2x4x512xf32> to vector<2x4x256xf32>
    %cst_73 = arith.constant 0.000000e+00 : f32
    %138 = vector.shape_cast %136 : vector<1x1x256xi1> to vector<1x1x256xi1>
    %139 = vector.broadcast %138 : vector<1x1x256xi1> to vector<2x4x256xi1>
    %140 = vector.broadcast %cst_73 : f32 to vector<2x4x256xf32>
    %141 = arith.select %139, %137, %140 : vector<2x4x256xi1>, vector<2x4x256xf32>
    %cst_74 = arith.constant 0.274068624 : f32
    %142 = vector.broadcast %cst_74 : f32 to vector<2x4x256xf32>
    %143 = arith.mulf %142, %141 : vector<2x4x256xf32>
    %144 = arith.addf %134, %143 : vector<2x4x256xf32>
    %c0_75 = arith.constant 0 : index
    %c0_76 = arith.constant 0 : index
    %c0_77 = arith.constant 0 : index
    %145 = vector.load %arg3[%c0_75, %c0_76, %c0_77] : memref<1x4x1xf32, #tpu.memory_space<vmem>>, vector<1x4x1xf32>
    %c0_78 = arith.constant 0 : index
    %c0_79 = arith.constant 0 : index
    %c0_80 = arith.constant 0 : index
    %146 = vector.load %arg4[%c0_78, %c0_79, %c0_80] : memref<1x4x1xf32, #tpu.memory_space<vmem>>, vector<1x4x1xf32>
    %cst_81 = arith.constant dense<0.000000e+00> : vector<2x4xf32>
    %147 = vector.multi_reduction <add>, %144, %cst_81 [2] : vector<2x4x256xf32> to vector<2x4xf32>
    %148 = vector.shape_cast %147 : vector<2x4xf32> to vector<2x4x1xf32>
    %cst_82 = arith.constant dense<0.000000e+00> : vector<4x1xf32>
    %149 = vector.multi_reduction <add>, %148, %cst_82 [0] : vector<2x4x1xf32> to vector<4x1xf32>
    %150 = vector.shape_cast %149 : vector<4x1xf32> to vector<1x4x1xf32>
    %151 = arith.mulf %144, %144 : vector<2x4x256xf32>
    %cst_83 = arith.constant dense<0.000000e+00> : vector<2x4xf32>
    %152 = vector.multi_reduction <add>, %151, %cst_83 [2] : vector<2x4x256xf32> to vector<2x4xf32>
    %153 = vector.shape_cast %152 : vector<2x4xf32> to vector<2x4x1xf32>
    %cst_84 = arith.constant dense<0.000000e+00> : vector<4x1xf32>
    %154 = vector.multi_reduction <add>, %153, %cst_84 [0] : vector<2x4x1xf32> to vector<4x1xf32>
    %155 = vector.shape_cast %154 : vector<4x1xf32> to vector<1x4x1xf32>
    %cst_85 = arith.constant 0.001953125 : f32
    %156 = vector.broadcast %cst_85 : f32 to vector<1x4x1xf32>
    %157 = arith.mulf %150, %156 : vector<1x4x1xf32>
    %cst_86 = arith.constant 0.001953125 : f32
    %158 = vector.broadcast %cst_86 : f32 to vector<1x4x1xf32>
    %159 = arith.mulf %155, %158 : vector<1x4x1xf32>
    %160 = arith.mulf %157, %157 : vector<1x4x1xf32>
    %161 = arith.subf %159, %160 : vector<1x4x1xf32>
    %cst_87 = arith.constant 9.99999974E-6 : f32
    %162 = vector.broadcast %cst_87 : f32 to vector<1x4x1xf32>
    %163 = arith.addf %161, %162 : vector<1x4x1xf32>
    %164 = math.rsqrt %163 : vector<1x4x1xf32>
    %165 = arith.mulf %145, %164 : vector<1x4x1xf32>
    %166 = arith.mulf %157, %165 : vector<1x4x1xf32>
    %167 = arith.subf %146, %166 : vector<1x4x1xf32>
    %168 = vector.broadcast %165 : vector<1x4x1xf32> to vector<2x4x256xf32>
    %169 = arith.mulf %144, %168 : vector<2x4x256xf32>
    %170 = vector.broadcast %167 : vector<1x4x1xf32> to vector<2x4x256xf32>
    %171 = arith.addf %169, %170 : vector<2x4x256xf32>
    %cst_88 = arith.constant 0.000000e+00 : f32
    %172 = vector.broadcast %cst_88 : f32 to vector<2x4x256xf32>
    %173 = arith.maximumf %171, %172 : vector<2x4x256xf32>
    %174 = arith.addf %0, %173 : vector<2x4x256xf32>
    %cst_89 = arith.constant 0.000000e+00 : f32
    %175 = vector.broadcast %cst_89 : f32 to vector<2x4x256xf32>
    %c0_90 = arith.constant 0 : index
    %c0_91 = arith.constant 0 : index
    %c0_92 = arith.constant 0 : index
    %c0_93 = arith.constant 0 : index
    %176 = vector.load %arg5[%c0_90, %c0_91, %c0_92, %c0_93] : memref<4x1x4x1xf32, #tpu.memory_space<vmem>>, vector<1x1x4x1xf32>
    %177 = vector.shape_cast %176 : vector<1x1x4x1xf32> to vector<1x4x1xf32>
    %178 = vector.extract_strided_slice %174 {offsets = [0, 0, 0], sizes = [2, 1, 256], strides = [1, 1, 1]} : vector<2x4x256xf32> to vector<2x1x256xf32>
    %179 = vector.broadcast %177 : vector<1x4x1xf32> to vector<2x4x256xf32>
    %180 = vector.broadcast %178 : vector<2x1x256xf32> to vector<2x4x256xf32>
    %181 = arith.mulf %179, %180 : vector<2x4x256xf32>
    %182 = arith.addf %175, %181 : vector<2x4x256xf32>
    %c1 = arith.constant 1 : index
    %c0_94 = arith.constant 0 : index
    %c0_95 = arith.constant 0 : index
    %c0_96 = arith.constant 0 : index
    %183 = vector.load %arg5[%c1, %c0_94, %c0_95, %c0_96] : memref<4x1x4x1xf32, #tpu.memory_space<vmem>>, vector<1x1x4x1xf32>
    %184 = vector.shape_cast %183 : vector<1x1x4x1xf32> to vector<1x4x1xf32>
    %185 = vector.extract_strided_slice %174 {offsets = [0, 1, 0], sizes = [2, 1, 256], strides = [1, 1, 1]} : vector<2x4x256xf32> to vector<2x1x256xf32>
    %186 = vector.broadcast %184 : vector<1x4x1xf32> to vector<2x4x256xf32>
    %187 = vector.broadcast %185 : vector<2x1x256xf32> to vector<2x4x256xf32>
    %188 = arith.mulf %186, %187 : vector<2x4x256xf32>
    %189 = arith.addf %182, %188 : vector<2x4x256xf32>
    %c2 = arith.constant 2 : index
    %c0_97 = arith.constant 0 : index
    %c0_98 = arith.constant 0 : index
    %c0_99 = arith.constant 0 : index
    %190 = vector.load %arg5[%c2, %c0_97, %c0_98, %c0_99] : memref<4x1x4x1xf32, #tpu.memory_space<vmem>>, vector<1x1x4x1xf32>
    %191 = vector.shape_cast %190 : vector<1x1x4x1xf32> to vector<1x4x1xf32>
    %192 = vector.extract_strided_slice %174 {offsets = [0, 2, 0], sizes = [2, 1, 256], strides = [1, 1, 1]} : vector<2x4x256xf32> to vector<2x1x256xf32>
    %193 = vector.broadcast %191 : vector<1x4x1xf32> to vector<2x4x256xf32>
    %194 = vector.broadcast %192 : vector<2x1x256xf32> to vector<2x4x256xf32>
    %195 = arith.mulf %193, %194 : vector<2x4x256xf32>
    %196 = arith.addf %189, %195 : vector<2x4x256xf32>
    %c3 = arith.constant 3 : index
    %c0_100 = arith.constant 0 : index
    %c0_101 = arith.constant 0 : index
    %c0_102 = arith.constant 0 : index
    %197 = vector.load %arg5[%c3, %c0_100, %c0_101, %c0_102] : memref<4x1x4x1xf32, #tpu.memory_space<vmem>>, vector<1x1x4x1xf32>
    %198 = vector.shape_cast %197 : vector<1x1x4x1xf32> to vector<1x4x1xf32>
    %199 = vector.extract_strided_slice %174 {offsets = [0, 3, 0], sizes = [2, 1, 256], strides = [1, 1, 1]} : vector<2x4x256xf32> to vector<2x1x256xf32>
    %200 = vector.broadcast %198 : vector<1x4x1xf32> to vector<2x4x256xf32>
    %201 = vector.broadcast %199 : vector<2x1x256xf32> to vector<2x4x256xf32>
    %202 = arith.mulf %200, %201 : vector<2x4x256xf32>
    %203 = arith.addf %196, %202 : vector<2x4x256xf32>
    %c0_103 = arith.constant 0 : index
    %c0_104 = arith.constant 0 : index
    %c0_105 = arith.constant 0 : index
    %204 = vector.load %arg6[%c0_103, %c0_104, %c0_105] : memref<1x4x1xf32, #tpu.memory_space<vmem>>, vector<1x4x1xf32>
    %205 = vector.broadcast %204 : vector<1x4x1xf32> to vector<2x4x256xf32>
    %206 = arith.addf %203, %205 : vector<2x4x256xf32>
    %c0_106 = arith.constant 0 : index
    %c0_107 = arith.constant 0 : index
    %c0_108 = arith.constant 0 : index
    %207 = vector.load %arg7[%c0_106, %c0_107, %c0_108] : memref<2x4x256xf32, #tpu.memory_space<vmem>>, vector<2x4x256xf32>
    tpu.vector_store %arg7[%c0_106, %c0_107, %c0_108], %206 {strides = array<i32>} : memref<2x4x256xf32, #tpu.memory_space<vmem>>, vector<2x4x256xf32>,
    return
  }
}

</mosaic_0001>

<llo_original>
// kernel: forward.1
$region0: #{forward.1}
  #allocation0 [shape = 'u32[]', space=smem, size = 0x4, offset = 0x4, fixed_abs, tag = 'smem constant byte address 0x4 - core index']
  #allocation1 [shape = 'u32[144,128]{1,0:T(1,128)}', space=vmem, size = 0x12000, scoped, tag = 'internal scratch']
  #allocation2 [shape = 'f32[2,4,512]{2,1,0:T(4,128)}', space=vmem, size = 0x4000, scoped, tag = 'scratch operand']
  %s0 = inlined_call_operand.vmem [shape: f32[2,4,256], index: 0, kind: input, shape index: {}]
  %s1 = inlined_call_operand.vmem [shape: f32[1,4,1], index: 1, kind: input, shape index: {}]
  %s2 = inlined_call_operand.vmem [shape: f32[1,4,1], index: 2, kind: input, shape index: {}]
  %s3 = inlined_call_operand.vmem [shape: f32[1,4,1], index: 3, kind: input, shape index: {}]
  %s4 = inlined_call_operand.vmem [shape: f32[1,4,1], index: 4, kind: input, shape index: {}]
  %s5 = inlined_call_operand.vmem [shape: f32[4,1,4,1], index: 5, kind: input, shape index: {}]
  %s6 = inlined_call_operand.vmem [shape: f32[1,4,1], index: 6, kind: input, shape index: {}]
  %s7 = inlined_call_operand.vmem [shape: f32[2,4,256], index: 7, kind: output, shape index: {}]
  %s8 = sld [smem:[#allocation0]]
  $region38: #{forward.1} parent=0
    _
  %s10 = ssub.s32 1, %s8
  %s11 = scalar_select 0, %s10, %s8
  // Predicated region
  $region2: #{forward.1} parent=0 // pred_check
    _
  $region3: #{forward.1} parent=0 // pred_check_branch
    %13 = sbr.rel (0) target = $region5
  $region4: #{forward.1} parent=0 // pred_region
    _
  $region5: #{forward.1} parent=0 // pred_fallthru
    _
  // Predicated region
  $region6: #{forward.1} parent=0 // pred_check
    _
  $region7: #{forward.1} parent=0 // pred_check_branch
    %15 = sbr.rel (0) target = $region9
  $region8: #{forward.1} parent=0 // pred_region
    _
  $region9: #{forward.1} parent=0 // pred_fallthru
    _
  // Predicated region
  $region10: #{forward.1} parent=0 // pred_check
    _
  $region11: #{forward.1} parent=0 // pred_check_branch
    %17 = sbr.rel (0) target = $region13
  $region12: #{forward.1} parent=0 // pred_region
    _
  $region13: #{forward.1} parent=0 // pred_fallthru
    _
  // Predicated region
  $region14: #{forward.1} parent=0 // pred_check
    _
  $region15: #{forward.1} parent=0 // pred_check_branch
    %19 = sbr.rel (0) target = $region17
  $region16: #{forward.1} parent=0 // pred_region
    _
  $region17: #{forward.1} parent=0 // pred_fallthru
    _
  // Predicated region
  $region18: #{forward.1} parent=0 // pred_check
    _
  $region19: #{forward.1} parent=0 // pred_check_branch
    %21 = sbr.rel (0) target = $region21
  $region20: #{forward.1} parent=0 // pred_region
    _
  $region21: #{forward.1} parent=0 // pred_fallthru
    _
  // Predicated region
  $region22: #{forward.1} parent=0 // pred_check
    _
  $region23: #{forward.1} parent=0 // pred_check_branch
    %23 = sbr.rel (0) target = $region25
  $region24: #{forward.1} parent=0 // pred_region
    _
  $region25: #{forward.1} parent=0 // pred_fallthru
    _
  // Predicated region
  $region26: #{forward.1} parent=0 // pred_check
    _
  $region27: #{forward.1} parent=0 // pred_check_branch
    %25 = sbr.rel (0) target = $region29
  $region28: #{forward.1} parent=0 // pred_region
    _
  $region29: #{forward.1} parent=0 // pred_fallthru
    _
  %v26 = vld [vmem:[%s0] sm:$0xff]
  %v27 = vld [vmem:[%s0 + $0x8] sm:$0xff]
  %v28 = vlaneseq
  %v29 = vand.u32 %v28, 127
  %v30 = vadd.s32 %v29, 128
  %vm31 = vcmp.lt.s32.totalorder %v29, 0
  %v32 = vsub.s32 0, %v29
  %v33 = vsel %vm31, %v32, %v29
  %v34 = vshrl.u32 %v33, 4
  %v35 = vand.u32 %v33, 15
  %v36 = vsub.s32 0, %v35
  %v37 = vsel %vm31, %v36, %v35
  %vm38 = vcmp.lt.s32.totalorder %v30, 0
  %v39 = vsub.s32 0, %v30
  %v40 = vsel %vm38, %v39, %v30
  %v41 = vshrl.u32 %v40, 4
  %v42 = vand.u32 %v40, 15
  %v43 = vsub.s32 0, %v42
  %v44 = vsel %vm38, %v43, %v42
  %vm45 = vcmp.ne.s32.totalorder %v37, 0
  %vm46 = vcmp.ne.s32.totalorder %v44, 0
  %vm47 = vcmp.lt.s32.totalorder %v37, 0
  %vm48 = vcmp.lt.s32.totalorder %v44, 0
  %vm49 = vmand %vm47, %vm45
  %vm50 = vmand %vm48, %vm46
  %v51 = vadd.s32 %v37, 16
  %v52 = vadd.s32 %v44, 16
  %v53 = vsel %vm49, %v51, %v37
  %v54 = vsel %vm50, %v52, %v44
  %55 = vst [vmem:[#allocation2] sm:$0xff] 0.0
  %56 = vst [vmem:[#allocation2 + $0x8] sm:$0xff] 0.0
  %57 = vst [vmem:[#allocation2 + $0x10] sm:$0xff] 0.0
  %58 = vst [vmem:[#allocation2 + $0x18] sm:$0xff] 0.0
  %59 = vst [vmem:[#allocation2 + $0x4] sm:$0xff] %v26
  %60 = vst [vmem:[#allocation2 + $0x14] sm:$0xff] %v27
  %v61 = vld [vmem:[#allocation2] sm:$0xff]
  %v62 = vld [vmem:[#allocation2 + $0x8] sm:$0xff]
  %v63 = vld [vmem:[#allocation2 + $0x10] sm:$0xff]
  %v64 = vld [vmem:[#allocation2 + $0x18] sm:$0xff]
  %v65 = vmul.f32 %v61, 3.0
  %v66 = vmul.f32 %v62, 3.0
  %v67 = vmul.f32 %v63, 3.0
  %v68 = vmul.f32 %v64, 3.0
  %v69 = vmul.f32 %v26, 10.0
  %v70 = vmul.f32 %v27, 10.0
  %73 = vrot.lane.b32.xlu0 %v69, 112
  %v74 = vpop.permute.xlu0 %73
  %75 = vrot.lane.b32.xlu0 %v70, 112
  %v76 = vpop.permute.xlu0 %75
  %v77 = vrot.slane %v74, 4
  %v78 = vrot.slane %v76, 4
  %vm79 = vcmask 916480
  %v80 = vsel %vm79, %v77, %v74
  %v81 = vsel %vm79, %v78, %v76
  %v86 = vadd.f32 %v65, %v80
  %v87 = vadd.f32 %v66, %v77
  %v88 = vadd.f32 %v67, %v81
  %v89 = vadd.f32 %v68, %v78
  %94 = vrot.lane.b32.xlu0 %v61, 112
  %v95 = vpop.permute.xlu0 %94
  %96 = vrot.lane.b32.xlu0 %v62, 112
  %v97 = vpop.permute.xlu0 %96
  %98 = vrot.lane.b32.xlu0 %v63, 112
  %v99 = vpop.permute.xlu0 %98
  %100 = vrot.lane.b32.xlu0 %v64, 112
  %v101 = vpop.permute.xlu0 %100
  %v102 = vrot.slane %v95, 4
  %v103 = vrot.slane %v97, 4
  %v104 = vrot.slane %v99, 4
  %v105 = vrot.slane %v101, 4
  %vm106 = vcmask 1043456
  %v107 = vsel %vm106, %v102, %v103
  %v108 = vsel %vm79, %v107, %v97
  %v109 = vsel %vm106, %v104, %v105
  %v110 = vsel %vm79, %v109, %v101
  %v113 = vmul.f32 %v108, 3.0
  %v114 = vmul.f32 %v110, 3.0
  %117 = vrot.lane.b32.xlu0 %v113, 112
  %v118 = vpop.permute.xlu0 %117
  %119 = vrot.lane.b32.xlu0 %v114, 112
  %v120 = vpop.permute.xlu0 %119
  %v121 = vrot.slane %v118, 4
  %v122 = vrot.slane %v120, 4
  %v123 = vsel %vm79, %v121, %v118
  %v124 = vsel %vm79, %v122, %v120
  %v129 = vadd.f32 %v86, %v123
  %v130 = vadd.f32 %v87, %v121
  %v131 = vadd.f32 %v88, %v124
  %v132 = vadd.f32 %v89, %v122
  %133 = vrot.lane.b32.xlu0 %v61, 16
  %v134 = vpop.permute.xlu0 %133
  %135 = vrot.lane.b32.xlu0 %v62, 16
  %v136 = vpop.permute.xlu0 %135
  %137 = vrot.lane.b32.xlu0 %v63, 16
  %v138 = vpop.permute.xlu0 %137
  %139 = vrot.lane.b32.xlu0 %v64, 16
  %v140 = vpop.permute.xlu0 %139
  %v141 = vrot.slane %v134, 4
  %v142 = vrot.slane %v136, 4
  %v143 = vrot.slane %v138, 4
  %v144 = vrot.slane %v140, 4
  %v145 = vsel %vm106, %v141, %v142
  %vm146 = vcmask 130048
  %v147 = vsel %vm146, %v134, %v145
  %v148 = vsel %vm106, %v143, %v144
  %v149 = vsel %vm146, %v138, %v148
  %v152 = vsub.f32 %v108, %v147
  %v153 = vsub.f32 %v110, %v149
  %158 = vrot.lane.b32.xlu0 %v129, 16
  %v159 = vpop.permute.xlu0 %158
  %160 = vrot.lane.b32.xlu0 %v130, 16
  %v161 = vpop.permute.xlu0 %160
  %162 = vrot.lane.b32.xlu0 %v131, 16
  %v163 = vpop.permute.xlu0 %162
  %164 = vrot.lane.b32.xlu0 %v132, 16
  %v165 = vpop.permute.xlu0 %164
  %v166 = vrot.slane %v159, 4
  %v167 = vrot.slane %v161, 4
  %v168 = vrot.slane %v163, 4
  %v169 = vrot.slane %v165, 4
  %v170 = vsel %vm106, %v166, %v167
  %v171 = vsel %vm146, %v159, %v170
  %v172 = vsel %vm106, %v168, %v169
  %v173 = vsel %vm146, %v163, %v172
  %176 = vst [vmem:[#allocation2 + $0x4] sm:$0xff] %v171
  %177 = vst [vmem:[#allocation2 + $0x14] sm:$0xff] %v173
  %v178 = vld [vmem:[#allocation2] sm:$0xff]
  %v179 = vld [vmem:[#allocation2 + $0x8] sm:$0xff]
  %v180 = vld [vmem:[#allocation2 + $0x10] sm:$0xff]
  %v181 = vld [vmem:[#allocation2 + $0x18] sm:$0xff]
  %vm182 = vcmp.lt.s32.totalorder %v53, 15
  %vm183 = vcmp.lt.s32.totalorder %v54, 15
  %v184 = vsel %vm182, 1, 0
  %v185 = vsel %vm183, 1, 0
  %vm186 = vcmp.eq.s32.totalorder %v184, 1
  %vm187 = vcmp.eq.s32.totalorder %v185, 1
  %v192 = vcombine.high %v178, %v178
  %v193 = vcombine.high %v179, %v179
  %v194 = vcombine.high %v180, %v180
  %v195 = vcombine.high %v181, %v181
  %196 = vrot.lane.b32.xlu0 %v192, 127
  %v197 = vpop.permute.xlu0 %196
  %198 = vrot.lane.b32.xlu0 %v179, 127
  %v199 = vpop.permute.xlu0 %198
  %200 = vrot.lane.b32.xlu0 %v193, 127
  %v201 = vpop.permute.xlu0 %200
  %202 = vrot.lane.b32.xlu0 %v194, 127
  %v203 = vpop.permute.xlu0 %202
  %204 = vrot.lane.b32.xlu0 %v181, 127
  %v205 = vpop.permute.xlu0 %204
  %206 = vrot.lane.b32.xlu0 %v195, 127
  %v207 = vpop.permute.xlu0 %206
  %vm208 = vcmask 1039360
  %v209 = vsel %vm208, %v197, %v199
  %v210 = vsel %vm208, %v199, %v201
  %v211 = vsel %vm208, %v203, %v205
  %v212 = vsel %vm208, %v205, %v207
  %v217 = vsel %vm186, %v209, 0.0
  %v218 = vsel %vm187, %v210, 0.0
  %v219 = vsel %vm186, %v211, 0.0
  %v220 = vsel %vm187, %v212, 0.0
  %vm221 = vcmp.ge.s32.totalorder %v53, 1
  %vm222 = vcmp.ge.s32.totalorder %v54, 1
  %v223 = vsel %vm221, 1, 0
  %v224 = vsel %vm222, 1, 0
  %vm225 = vcmp.eq.s32.totalorder %v223, 1
  %vm226 = vcmp.eq.s32.totalorder %v224, 1
  %227 = vrot.lane.b32.xlu0 %v178, 1
  %v228 = vpop.permute.xlu0 %227
  %229 = vrot.lane.b32.xlu0 %v192, 1
  %v230 = vpop.permute.xlu0 %229
  %231 = vrot.lane.b32.xlu0 %v179, 1
  %v232 = vpop.permute.xlu0 %231
  %233 = vrot.lane.b32.xlu0 %v180, 1
  %v234 = vpop.permute.xlu0 %233
  %235 = vrot.lane.b32.xlu0 %v194, 1
  %v236 = vpop.permute.xlu0 %235
  %237 = vrot.lane.b32.xlu0 %v181, 1
  %v238 = vpop.permute.xlu0 %237
  %vm239 = vcmask 7168
  %v240 = vsel %vm239, %v228, %v230
  %v241 = vsel %vm239, %v230, %v232
  %v242 = vsel %vm239, %v234, %v236
  %v243 = vsel %vm239, %v236, %v238
  %v248 = vsel %vm225, %v240, 0.0
  %v249 = vsel %vm226, %v241, 0.0
  %v250 = vsel %vm225, %v242, 0.0
  %v251 = vsel %vm226, %v243, 0.0
  %v252 = vsub.f32 %v217, %v248
  %v253 = vsub.f32 %v218, %v249
  %v254 = vsub.f32 %v219, %v250
  %v255 = vsub.f32 %v220, %v251
  %256 = vst [vmem:[#allocation2 + $0x4] sm:$0xff] %v152
  %257 = vst [vmem:[#allocation2 + $0x14] sm:$0xff] %v153
  %v258 = vld [vmem:[#allocation2] sm:$0xff]
  %v259 = vld [vmem:[#allocation2 + $0x8] sm:$0xff]
  %v260 = vld [vmem:[#allocation2 + $0x10] sm:$0xff]
  %v261 = vld [vmem:[#allocation2 + $0x18] sm:$0xff]
  %v266 = vcombine.high %v258, %v258
  %v267 = vcombine.high %v260, %v260
  %268 = vrot.lane.b32.xlu0 %v258, 1
  %v269 = vpop.permute.xlu0 %268
  %270 = vrot.lane.b32.xlu0 %v266, 1
  %v271 = vpop.permute.xlu0 %270
  %272 = vrot.lane.b32.xlu0 %v259, 1
  %v273 = vpop.permute.xlu0 %272
  %274 = vrot.lane.b32.xlu0 %v260, 1
  %v275 = vpop.permute.xlu0 %274
  %276 = vrot.lane.b32.xlu0 %v267, 1
  %v277 = vpop.permute.xlu0 %276
  %278 = vrot.lane.b32.xlu0 %v261, 1
  %v279 = vpop.permute.xlu0 %278
  %v280 = vsel %vm239, %v269, %v271
  %v281 = vsel %vm239, %v271, %v273
  %v282 = vsel %vm239, %v275, %v277
  %v283 = vsel %vm239, %v277, %v279
  %v288 = vsel %vm225, %v280, 0.0
  %v289 = vsel %vm226, %v281, 0.0
  %v290 = vsel %vm225, %v282, 0.0
  %v291 = vsel %vm226, %v283, 0.0
  %v292 = vmul.f32 %v288, 3.0
  %v293 = vmul.f32 %v289, 3.0
  %v294 = vmul.f32 %v290, 3.0
  %v295 = vmul.f32 %v291, 3.0
  %v296 = vmul.f32 %v152, 10.0
  %v297 = vmul.f32 %v153, 10.0
  %v300 = vcombine.high %v296, %v296
  %v301 = vcombine.high %v297, %v297
  %v304 = vadd.f32 %v292, %v296
  %v305 = vadd.f32 %v293, %v300
  %v306 = vadd.f32 %v294, %v297
  %v307 = vadd.f32 %v295, %v301
  %v308 = vcombine.high %v259, %v259
  %v309 = vcombine.high %v261, %v261
  %310 = vrot.lane.b32.xlu0 %v266, 127
  %v311 = vpop.permute.xlu0 %310
  %312 = vrot.lane.b32.xlu0 %v259, 127
  %v313 = vpop.permute.xlu0 %312
  %314 = vrot.lane.b32.xlu0 %v308, 127
  %v315 = vpop.permute.xlu0 %314
  %316 = vrot.lane.b32.xlu0 %v267, 127
  %v317 = vpop.permute.xlu0 %316
  %318 = vrot.lane.b32.xlu0 %v261, 127
  %v319 = vpop.permute.xlu0 %318
  %320 = vrot.lane.b32.xlu0 %v309, 127
  %v321 = vpop.permute.xlu0 %320
  %v322 = vsel %vm208, %v311, %v313
  %v323 = vsel %vm208, %v313, %v315
  %v324 = vsel %vm208, %v317, %v319
  %v325 = vsel %vm208, %v319, %v321
  %v330 = vsel %vm186, %v322, 0.0
  %v331 = vsel %vm187, %v323, 0.0
  %v332 = vsel %vm186, %v324, 0.0
  %v333 = vsel %vm187, %v325, 0.0
  %v334 = vmul.f32 %v330, 3.0
  %v335 = vmul.f32 %v331, 3.0
  %v336 = vmul.f32 %v332, 3.0
  %v337 = vmul.f32 %v333, 3.0
  %v338 = vadd.f32 %v304, %v334
  %v339 = vadd.f32 %v305, %v335
  %v340 = vadd.f32 %v306, %v336
  %v341 = vadd.f32 %v307, %v337
  %v342 = vmul.f32 %v252, %v252
  %v343 = vmul.f32 %v253, %v253
  %v344 = vmul.f32 %v254, %v254
  %v345 = vmul.f32 %v255, %v255
  %v346 = vmul.f32 %v338, %v338
  %v347 = vmul.f32 %v339, %v339
  %v348 = vmul.f32 %v340, %v340
  %v349 = vmul.f32 %v341, %v341
  %v350 = vadd.f32 %v342, %v346
  %v351 = vadd.f32 %v343, %v347
  %v352 = vadd.f32 %v344, %v348
  %v353 = vadd.f32 %v345, %v349
  %v354 = vadd.f32 %v350, 1e-06
  %v355 = vadd.f32 %v351, 1e-06
  %v356 = vadd.f32 %v352, 1e-06
  %v357 = vadd.f32 %v353, 1e-06
  %v358 = vrsqrt.pop %v354
  %v359 = vmul.f32 %v354, %v358
  %vm360 = vcmp.eq.f32.partialorder %v354, inf
  %v361 = vsel %vm360, %v354, %v359
  %vm362 = vcmp.eq.f32.partialorder %v354, 0.0
  %v363 = vand.u32 %v354, 2147483648
  %v364 = vsel %vm362, %v363, %v361
  %v365 = vrsqrt.pop %v355
  %v366 = vmul.f32 %v355, %v365
  %vm367 = vcmp.eq.f32.partialorder %v355, inf
  %v368 = vsel %vm367, %v355, %v366
  %vm369 = vcmp.eq.f32.partialorder %v355, 0.0
  %v370 = vand.u32 %v355, 2147483648
  %v371 = vsel %vm369, %v370, %v368
  %v372 = vrsqrt.pop %v356
  %v373 = vmul.f32 %v356, %v372
  %vm374 = vcmp.eq.f32.partialorder %v356, inf
  %v375 = vsel %vm374, %v356, %v373
  %vm376 = vcmp.eq.f32.partialorder %v356, 0.0
  %v377 = vand.u32 %v356, 2147483648
  %v378 = vsel %vm376, %v377, %v375
  %v379 = vrsqrt.pop %v357
  %v380 = vmul.f32 %v357, %v379
  %vm381 = vcmp.eq.f32.partialorder %v357, inf
  %v382 = vsel %vm381, %v357, %v380
  %vm383 = vcmp.eq.f32.partialorder %v357, 0.0
  %v384 = vand.u32 %v357, 2147483648
  %v385 = vsel %vm383, %v384, %v382
  %v386 = vld [vmem:[%s1] sm:$0xf]
  %v387 = vld [vmem:[%s2] sm:$0xf]
  %v388 = vsel %vm106, %v364, 0.0
  %v389 = vsel %vm106, %v371, 0.0
  %v390 = vadd.f32 %v388, %v389
  %391 = vadd.xlane.f32.xlu0 %v390
  %v392 = vpop.xlane.xlu0 %391
  %v393 = vsel %vm106, %v378, 0.0
  %v394 = vsel %vm106, %v385, 0.0
  %v395 = vadd.f32 %v393, %v394
  %396 = vadd.xlane.f32.xlu0 %v395
  %v397 = vpop.xlane.xlu0 %396
  %v398 = vsel %vm106, %v392, 0.0
  %v399 = vsel %vm106, %v397, 0.0
  %v400 = vadd.f32 %v398, %v399
  %v401 = vmul.f32 %v364, %v364
  %v402 = vmul.f32 %v371, %v371
  %v403 = vmul.f32 %v378, %v378
  %v404 = vmul.f32 %v385, %v385
  %v405 = vsel %vm106, %v401, 0.0
  %v406 = vsel %vm106, %v402, 0.0
  %v407 = vadd.f32 %v405, %v406
  %408 = vadd.xlane.f32.xlu0 %v407
  %v409 = vpop.xlane.xlu0 %408
  %v410 = vsel %vm106, %v403, 0.0
  %v411 = vsel %vm106, %v404, 0.0
  %v412 = vadd.f32 %v410, %v411
  %413 = vadd.xlane.f32.xlu0 %v412
  %v414 = vpop.xlane.xlu0 %413
  %v415 = vsel %vm106, %v409, 0.0
  %v416 = vsel %vm106, %v414, 0.0
  %v417 = vadd.f32 %v415, %v416
  %v418 = vmul.f32 %v400, 0.001953125
  %v419 = vmul.f32 %v417, 0.001953125
  %v420 = vmul.f32 %v418, %v418
  %v421 = vsub.f32 %v419, %v420
  %v422 = vadd.f32 %v421, 1e-05
  %v423 = vrsqrt.pop %v422
  %v424 = vmul.f32 %v386, %v423
  %v425 = vmul.f32 %v418, %v424
  %v426 = vsub.f32 %v387, %v425
  %428 = vset.pattern.permute.xlu0 0
  %429 = vperm.xlu0 %428, %v424
  %v430 = vpop.permute.xlu0 %429
  %v432 = vmul.f32 %v364, %v430
  %v433 = vmul.f32 %v371, %v430
  %v434 = vmul.f32 %v378, %v430
  %v435 = vmul.f32 %v385, %v430
  %437 = vset.pattern.permute.xlu0 0
  %438 = vperm.xlu0 %437, %v426
  %v439 = vpop.permute.xlu0 %438
  %v441 = vadd.f32 %v432, %v439
  %v442 = vadd.f32 %v433, %v439
  %v443 = vadd.f32 %v434, %v439
  %v444 = vadd.f32 %v435, %v439
  %v445 = vmax.f32 %v441, 0.0
  %v446 = vmax.f32 %v442, 0.0
  %v447 = vmax.f32 %v443, 0.0
  %v448 = vmax.f32 %v444, 0.0
  %v453 = vcombine.low %v445, %v446
  %v454 = vcombine.low %v447, %v448
  %457 = vst [vmem:[#allocation2 + $0x4] sm:$0xff] %v453
  %458 = vst [vmem:[#allocation2 + $0x14] sm:$0xff] %v454
  %v459 = vld [vmem:[#allocation2] sm:$0xff]
  %v460 = vld [vmem:[#allocation2 + $0x8] sm:$0xff]
  %v461 = vld [vmem:[#allocation2 + $0x10] sm:$0xff]
  %v462 = vld [vmem:[#allocation2 + $0x18] sm:$0xff]
  %v463 = vmul.f32 %v445, 0.45186275
  %v464 = vmul.f32 %v446, 0.45186275
  %v465 = vmul.f32 %v447, 0.45186275
  %v466 = vmul.f32 %v448, 0.45186275
  %v467 = vmul.f32 %v459, 0.27406862
  %v468 = vmul.f32 %v460, 0.27406862
  %v469 = vmul.f32 %v461, 0.27406862
  %v470 = vmul.f32 %v462, 0.27406862
  %v475 = vcombine.high %v467, %v467
  %v476 = vcombine.high %v469, %v469
  %477 = vrot.lane.b32.xlu0 %v467, 16
  %v478 = vpop.permute.xlu0 %477
  %479 = vrot.lane.b32.xlu0 %v475, 16
  %v480 = vpop.permute.xlu0 %479
  %481 = vrot.lane.b32.xlu0 %v468, 16
  %v482 = vpop.permute.xlu0 %481
  %483 = vrot.lane.b32.xlu0 %v469, 16
  %v484 = vpop.permute.xlu0 %483
  %485 = vrot.lane.b32.xlu0 %v476, 16
  %v486 = vpop.permute.xlu0 %485
  %487 = vrot.lane.b32.xlu0 %v470, 16
  %v488 = vpop.permute.xlu0 %487
  %v489 = vsel %vm146, %v478, %v480
  %v490 = vsel %vm146, %v480, %v482
  %v491 = vsel %vm146, %v484, %v486
  %v492 = vsel %vm146, %v486, %v488
  %v497 = vadd.f32 %v463, %v489
  %v498 = vadd.f32 %v464, %v490
  %v499 = vadd.f32 %v465, %v491
  %v500 = vadd.f32 %v466, %v492
  %505 = vrot.lane.b32.xlu0 %v459, 112
  %v506 = vpop.permute.xlu0 %505
  %507 = vrot.lane.b32.xlu0 %v460, 112
  %v508 = vpop.permute.xlu0 %507
  %509 = vrot.lane.b32.xlu0 %v461, 112
  %v510 = vpop.permute.xlu0 %509
  %511 = vrot.lane.b32.xlu0 %v462, 112
  %v512 = vpop.permute.xlu0 %511
  %v513 = vrot.slane %v506, 4
  %v514 = vrot.slane %v508, 4
  %v515 = vrot.slane %v510, 4
  %v516 = vrot.slane %v512, 4
  %v517 = vsel %vm106, %v513, %v514
  %v518 = vsel %vm79, %v517, %v508
  %v519 = vsel %vm106, %v515, %v516
  %v520 = vsel %vm79, %v519, %v512
  %v523 = vmul.f32 %v518, 0.27406862
  %v524 = vmul.f32 %v520, 0.27406862
  %v527 = vcombine.high %v523, %v523
  %v528 = vcombine.high %v524, %v524
  %v531 = vadd.f32 %v497, %v523
  %v532 = vadd.f32 %v498, %v527
  %v533 = vadd.f32 %v499, %v524
  %v534 = vadd.f32 %v500, %v528
  %v539 = vcombine.low %v531, %v532
  %v540 = vcombine.low %v533, %v534
  %543 = vst [vmem:[#allocation2 + $0x4] sm:$0xff] %v539
  %544 = vst [vmem:[#allocation2 + $0x14] sm:$0xff] %v540
  %v545 = vld [vmem:[#allocation2] sm:$0xff]
  %v546 = vld [vmem:[#allocation2 + $0x8] sm:$0xff]
  %v547 = vld [vmem:[#allocation2 + $0x10] sm:$0xff]
  %v548 = vld [vmem:[#allocation2 + $0x18] sm:$0xff]
  %v549 = vmul.f32 %v531, 0.45186275
  %v550 = vmul.f32 %v532, 0.45186275
  %v551 = vmul.f32 %v533, 0.45186275
  %v552 = vmul.f32 %v534, 0.45186275
  %v557 = vcombine.high %v545, %v545
  %v558 = vcombine.high %v547, %v547
  %559 = vrot.lane.b32.xlu0 %v545, 1
  %v560 = vpop.permute.xlu0 %559
  %561 = vrot.lane.b32.xlu0 %v557, 1
  %v562 = vpop.permute.xlu0 %561
  %563 = vrot.lane.b32.xlu0 %v546, 1
  %v564 = vpop.permute.xlu0 %563
  %565 = vrot.lane.b32.xlu0 %v547, 1
  %v566 = vpop.permute.xlu0 %565
  %567 = vrot.lane.b32.xlu0 %v558, 1
  %v568 = vpop.permute.xlu0 %567
  %569 = vrot.lane.b32.xlu0 %v548, 1
  %v570 = vpop.permute.xlu0 %569
  %v571 = vsel %vm239, %v560, %v562
  %v572 = vsel %vm239, %v562, %v564
  %v573 = vsel %vm239, %v566, %v568
  %v574 = vsel %vm239, %v568, %v570
  %v579 = vsel %vm225, %v571, 0.0
  %v580 = vsel %vm226, %v572, 0.0
  %v581 = vsel %vm225, %v573, 0.0
  %v582 = vsel %vm226, %v574, 0.0
  %v583 = vmul.f32 %v579, 0.27406862
  %v584 = vmul.f32 %v580, 0.27406862
  %v585 = vmul.f32 %v581, 0.27406862
  %v586 = vmul.f32 %v582, 0.27406862
  %v587 = vadd.f32 %v549, %v583
  %v588 = vadd.f32 %v550, %v584
  %v589 = vadd.f32 %v551, %v585
  %v590 = vadd.f32 %v552, %v586
  %v591 = vcombine.high %v546, %v546
  %v592 = vcombine.high %v548, %v548
  %593 = vrot.lane.b32.xlu0 %v557, 127
  %v594 = vpop.permute.xlu0 %593
  %595 = vrot.lane.b32.xlu0 %v546, 127
  %v596 = vpop.permute.xlu0 %595
  %597 = vrot.lane.b32.xlu0 %v591, 127
  %v598 = vpop.permute.xlu0 %597
  %599 = vrot.lane.b32.xlu0 %v558, 127
  %v600 = vpop.permute.xlu0 %599
  %601 = vrot.lane.b32.xlu0 %v548, 127
  %v602 = vpop.permute.xlu0 %601
  %603 = vrot.lane.b32.xlu0 %v592, 127
  %v604 = vpop.permute.xlu0 %603
  %v605 = vsel %vm208, %v594, %v596
  %v606 = vsel %vm208, %v596, %v598
  %v607 = vsel %vm208, %v600, %v602
  %v608 = vsel %vm208, %v602, %v604
  %v613 = vsel %vm186, %v605, 0.0
  %v614 = vsel %vm187, %v606, 0.0
  %v615 = vsel %vm186, %v607, 0.0
  %v616 = vsel %vm187, %v608, 0.0
  %v617 = vmul.f32 %v613, 0.27406862
  %v618 = vmul.f32 %v614, 0.27406862
  %v619 = vmul.f32 %v615, 0.27406862
  %v620 = vmul.f32 %v616, 0.27406862
  %v621 = vadd.f32 %v587, %v617
  %v622 = vadd.f32 %v588, %v618
  %v623 = vadd.f32 %v589, %v619
  %v624 = vadd.f32 %v590, %v620
  %v625 = vld [vmem:[%s3] sm:$0xf]
  %v626 = vld [vmem:[%s4] sm:$0xf]
  %v627 = vsel %vm106, %v621, 0.0
  %v628 = vsel %vm106, %v622, 0.0
  %v629 = vadd.f32 %v627, %v628
  %630 = vadd.xlane.f32.xlu0 %v629
  %v631 = vpop.xlane.xlu0 %630
  %v632 = vsel %vm106, %v623, 0.0
  %v633 = vsel %vm106, %v624, 0.0
  %v634 = vadd.f32 %v632, %v633
  %635 = vadd.xlane.f32.xlu0 %v634
  %v636 = vpop.xlane.xlu0 %635
  %v637 = vsel %vm106, %v631, 0.0
  %v638 = vsel %vm106, %v636, 0.0
  %v639 = vadd.f32 %v637, %v638
  %v640 = vmul.f32 %v621, %v621
  %v641 = vmul.f32 %v622, %v622
  %v642 = vmul.f32 %v623, %v623
  %v643 = vmul.f32 %v624, %v624
  %v644 = vsel %vm106, %v640, 0.0
  %v645 = vsel %vm106, %v641, 0.0
  %v646 = vadd.f32 %v644, %v645
  %647 = vadd.xlane.f32.xlu0 %v646
  %v648 = vpop.xlane.xlu0 %647
  %v649 = vsel %vm106, %v642, 0.0
  %v650 = vsel %vm106, %v643, 0.0
  %v651 = vadd.f32 %v649, %v650
  %652 = vadd.xlane.f32.xlu0 %v651
  %v653 = vpop.xlane.xlu0 %652
  %v654 = vsel %vm106, %v648, 0.0
  %v655 = vsel %vm106, %v653, 0.0
  %v656 = vadd.f32 %v654, %v655
  %v657 = vmul.f32 %v639, 0.001953125
  %v658 = vmul.f32 %v656, 0.001953125
  %v659 = vmul.f32 %v657, %v657
  %v660 = vsub.f32 %v658, %v659
  %v661 = vadd.f32 %v660, 1e-05
  %v662 = vrsqrt.pop %v661
  %v663 = vmul.f32 %v625, %v662
  %v664 = vmul.f32 %v657, %v663
  %v665 = vsub.f32 %v626, %v664
  %667 = vset.pattern.permute.xlu0 0
  %668 = vperm.xlu0 %667, %v663
  %v669 = vpop.permute.xlu0 %668
  %v671 = vmul.f32 %v621, %v669
  %v672 = vmul.f32 %v622, %v669
  %v673 = vmul.f32 %v623, %v669
  %v674 = vmul.f32 %v624, %v669
  %676 = vset.pattern.permute.xlu0 0
  %677 = vperm.xlu0 %676, %v665
  %v678 = vpop.permute.xlu0 %677
  %v680 = vadd.f32 %v671, %v678
  %v681 = vadd.f32 %v672, %v678
  %v682 = vadd.f32 %v673, %v678
  %v683 = vadd.f32 %v674, %v678
  %v684 = vmax.f32 %v680, 0.0
  %v685 = vmax.f32 %v681, 0.0
  %v686 = vmax.f32 %v682, 0.0
  %v687 = vmax.f32 %v683, 0.0
  %v692 = vcombine.low %v684, %v685
  %v693 = vcombine.low %v686, %v687
  %v696 = vadd.f32 %v26, %v692
  %v697 = vadd.f32 %v27, %v693
  %v698 = vld [vmem:[%s5] sm:$0xf]
  %700 = vset.pattern.permute.xlu0 0
  %701 = vperm.xlu0 %700, %v698
  %v702 = vpop.permute.xlu0 %701
  %v706 = vlaneseq
  %v707 = vshrl.u32 %v706, 7
  %v708 = vsub.s32 0, %v707
  %v709 = vrot.slane %v696, %v708
  %v710 = vlaneseq
  %v711 = vshrl.u32 %v710, 7
  %v712 = vsub.s32 4, %v711
  %v713 = vrot.slane %v696, %v712
  %v714 = vlaneseq
  %v715 = vshrl.u32 %v714, 7
  %v716 = vsub.s32 0, %v715
  %v717 = vrot.slane %v697, %v716
  %v718 = vlaneseq
  %v719 = vshrl.u32 %v718, 7
  %v720 = vsub.s32 4, %v719
  %v721 = vrot.slane %v697, %v720
  %v726 = vlaneseq
  %v727 = vshrl.u32 %v726, 7
  %v728 = vsub.s32 0, %v727
  %v729 = vrot.slane %v709, %v728
  %v730 = vlaneseq
  %v731 = vshrl.u32 %v730, 7
  %v732 = vsub.s32 0, %v731
  %v733 = vrot.slane %v713, %v732
  %v734 = vlaneseq
  %v735 = vshrl.u32 %v734, 7
  %v736 = vsub.s32 0, %v735
  %v737 = vrot.slane %v717, %v736
  %v738 = vlaneseq
  %v739 = vshrl.u32 %v738, 7
  %v740 = vsub.s32 0, %v739
  %v741 = vrot.slane %v721, %v740
  %v742 = vmul.f32 %v702, %v729
  %v743 = vmul.f32 %v702, %v733
  %v744 = vmul.f32 %v702, %v737
  %v745 = vmul.f32 %v702, %v741
  %v746 = vadd.f32 %v742, 0.0
  %v747 = vadd.f32 %v743, 0.0
  %v748 = vadd.f32 %v744, 0.0
  %v749 = vadd.f32 %v745, 0.0
  %s750 = scalar_lea.vmem %s5, 4
  %v751 = vld [vmem:[%s750] sm:$0xf]
  %753 = vset.pattern.permute.xlu0 0
  %754 = vperm.xlu0 %753, %v751
  %v755 = vpop.permute.xlu0 %754
  %v757 = vlaneseq
  %v758 = vshrl.u32 %v757, 7
  %v759 = vsub.s32 1, %v758
  %v760 = vrot.slane %v696, %v759
  %v761 = vlaneseq
  %v762 = vshrl.u32 %v761, 7
  %v763 = vsub.s32 5, %v762
  %v764 = vrot.slane %v696, %v763
  %v765 = vlaneseq
  %v766 = vshrl.u32 %v765, 7
  %v767 = vsub.s32 1, %v766
  %v768 = vrot.slane %v697, %v767
  %v769 = vlaneseq
  %v770 = vshrl.u32 %v769, 7
  %v771 = vsub.s32 5, %v770
  %v772 = vrot.slane %v697, %v771
  %v777 = vlaneseq
  %v778 = vshrl.u32 %v777, 7
  %v779 = vsub.s32 1, %v778
  %v780 = vrot.slane %v760, %v779
  %v781 = vlaneseq
  %v782 = vshrl.u32 %v781, 7
  %v783 = vsub.s32 1, %v782
  %v784 = vrot.slane %v764, %v783
  %v785 = vlaneseq
  %v786 = vshrl.u32 %v785, 7
  %v787 = vsub.s32 1, %v786
  %v788 = vrot.slane %v768, %v787
  %v789 = vlaneseq
  %v790 = vshrl.u32 %v789, 7
  %v791 = vsub.s32 1, %v790
  %v792 = vrot.slane %v772, %v791
  %v793 = vmul.f32 %v755, %v780
  %v794 = vmul.f32 %v755, %v784
  %v795 = vmul.f32 %v755, %v788
  %v796 = vmul.f32 %v755, %v792
  %v797 = vadd.f32 %v746, %v793
  %v798 = vadd.f32 %v747, %v794
  %v799 = vadd.f32 %v748, %v795
  %v800 = vadd.f32 %v749, %v796
  %s801 = scalar_lea.vmem %s5, 8
  %v802 = vld [vmem:[%s801] sm:$0xf]
  %804 = vset.pattern.permute.xlu0 0
  %805 = vperm.xlu0 %804, %v802
  %v806 = vpop.permute.xlu0 %805
  %v808 = vlaneseq
  %v809 = vshrl.u32 %v808, 7
  %v810 = vsub.s32 2, %v809
  %v811 = vrot.slane %v696, %v810
  %v812 = vlaneseq
  %v813 = vshrl.u32 %v812, 7
  %v814 = vsub.s32 6, %v813
  %v815 = vrot.slane %v696, %v814
  %v816 = vlaneseq
  %v817 = vshrl.u32 %v816, 7
  %v818 = vsub.s32 2, %v817
  %v819 = vrot.slane %v697, %v818
  %v820 = vlaneseq
  %v821 = vshrl.u32 %v820, 7
  %v822 = vsub.s32 6, %v821
  %v823 = vrot.slane %v697, %v822
  %v828 = vlaneseq
  %v829 = vshrl.u32 %v828, 7
  %v830 = vsub.s32 2, %v829
  %v831 = vrot.slane %v811, %v830
  %v832 = vlaneseq
  %v833 = vshrl.u32 %v832, 7
  %v834 = vsub.s32 2, %v833
  %v835 = vrot.slane %v815, %v834
  %v836 = vlaneseq
  %v837 = vshrl.u32 %v836, 7
  %v838 = vsub.s32 2, %v837
  %v839 = vrot.slane %v819, %v838
  %v840 = vlaneseq
  %v841 = vshrl.u32 %v840, 7
  %v842 = vsub.s32 2, %v841
  %v843 = vrot.slane %v823, %v842
  %v844 = vmul.f32 %v806, %v831
  %v845 = vmul.f32 %v806, %v835
  %v846 = vmul.f32 %v806, %v839
  %v847 = vmul.f32 %v806, %v843
  %v848 = vadd.f32 %v797, %v844
  %v849 = vadd.f32 %v798, %v845
  %v850 = vadd.f32 %v799, %v846
  %v851 = vadd.f32 %v800, %v847
  %s852 = scalar_lea.vmem %s5, 12
  %v853 = vld [vmem:[%s852] sm:$0xf]
  %855 = vset.pattern.permute.xlu0 0
  %856 = vperm.xlu0 %855, %v853
  %v857 = vpop.permute.xlu0 %856
  %v859 = vlaneseq
  %v860 = vshrl.u32 %v859, 7
  %v861 = vsub.s32 3, %v860
  %v862 = vrot.slane %v696, %v861
  %v863 = vlaneseq
  %v864 = vshrl.u32 %v863, 7
  %v865 = vsub.s32 7, %v864
  %v866 = vrot.slane %v696, %v865
  %v867 = vlaneseq
  %v868 = vshrl.u32 %v867, 7
  %v869 = vsub.s32 3, %v868
  %v870 = vrot.slane %v697, %v869
  %v871 = vlaneseq
  %v872 = vshrl.u32 %v871, 7
  %v873 = vsub.s32 7, %v872
  %v874 = vrot.slane %v697, %v873
  %v879 = vlaneseq
  %v880 = vshrl.u32 %v879, 7
  %v881 = vsub.s32 3, %v880
  %v882 = vrot.slane %v862, %v881
  %v883 = vlaneseq
  %v884 = vshrl.u32 %v883, 7
  %v885 = vsub.s32 3, %v884
  %v886 = vrot.slane %v866, %v885
  %v887 = vlaneseq
  %v888 = vshrl.u32 %v887, 7
  %v889 = vsub.s32 3, %v888
  %v890 = vrot.slane %v870, %v889
  %v891 = vlaneseq
  %v892 = vshrl.u32 %v891, 7
  %v893 = vsub.s32 3, %v892
  %v894 = vrot.slane %v874, %v893
  %v895 = vmul.f32 %v857, %v882
  %v896 = vmul.f32 %v857, %v886
  %v897 = vmul.f32 %v857, %v890
  %v898 = vmul.f32 %v857, %v894
  %v899 = vadd.f32 %v848, %v895
  %v900 = vadd.f32 %v849, %v896
  %v901 = vadd.f32 %v850, %v897
  %v902 = vadd.f32 %v851, %v898
  %v903 = vld [vmem:[%s6] sm:$0xf]
  %905 = vset.pattern.permute.xlu0 0
  %906 = vperm.xlu0 %905, %v903
  %v907 = vpop.permute.xlu0 %906
  %v909 = vadd.f32 %v899, %v907
  %v910 = vadd.f32 %v900, %v907
  %v911 = vadd.f32 %v901, %v907
  %v912 = vadd.f32 %v902, %v907
  %v917 = vcombine.low %v909, %v910
  %v918 = vcombine.low %v911, %v912
  %921 = vst [vmem:[%s7] sm:$0xff] %v917
  %922 = vst [vmem:[%s7 + $0x8] sm:$0xff] %v918
  // Predicated region
  $region30: #{forward.1} parent=0 // pred_check
    _
  $region31: #{forward.1} parent=0 // pred_check_branch
    %924 = sbr.rel (0) target = $region33
  $region32: #{forward.1} parent=0 // pred_region
    _
  $region33: #{forward.1} parent=0 // pred_fallthru
    _
  // Predicated region
  $region34: #{forward.1} parent=0 // pred_check
    _
  $region35: #{forward.1} parent=0 // pred_check_branch
    %926 = sbr.rel (0) target = $region37
  $region36: #{forward.1} parent=0 // pred_region
    _
  $region37: #{forward.1} parent=0 // pred_fallthru
    _

</llo_original>
